<compile_context>
chip_gen: v5e
topology: v5e:2x2
jax: 0.10.0
libtpu: 0.0.40
codegen_flags: <defaults>
</compile_context>

<pallas_src>
import functools

import numpy as np
import jax
import jax.numpy as jnp
from jax.experimental import pallas as pl
from jax.experimental.pallas import tpu as pltpu


POOL_OUT = 7 * 7      # AdaptiveAvgPool2d((7, 7)) -> 49 pooled pixels per channel
_LANE = 128
_SUBLANE = 8


# ---------------------------------------------------------------------------
# Kernels
# ---------------------------------------------------------------------------

def _pool_kernel(x_ref, p_ref, o_ref):
    # (tm, H*W) @ (H*W, 128-padded) -> (tm, 128-padded)  avg-pool on the MXU, bf16 out
    o_ref[...] = jnp.dot(x_ref[...], p_ref[...],
                         preferred_element_type=jnp.float32).astype(o_ref.dtype)


def _linear_kernel(x_ref, w_ref, b_ref, o_ref, acc_ref, *, relu, tk, act_resident):
    # grid = (j: output-column tiles [parallel], k: reduction tiles [arbitrary])
    k = pl.program_id(1)

    @pl.when(k == 0)
    def _init():
        acc_ref[...] = jnp.zeros_like(acc_ref)

    if act_resident and x_ref.shape[1] != tk:
        # full (M, K) activation block is resident in VMEM; take this K-step's slice
        x = x_ref[:, pl.ds(pl.multiple_of(k * tk, _LANE), tk)]
    else:
        x = x_ref[...]
    acc_ref[...] += jnp.dot(x, w_ref[...], preferred_element_type=jnp.float32)

    @pl.when(k == pl.num_programs(1) - 1)
    def _finalize():
        r = acc_ref[...] + b_ref[...]
        if relu:
            r = jnp.maximum(r, 0.0)
        o_ref[...] = r.astype(o_ref.dtype)


# ---------------------------------------------------------------------------
# Tile selection / VMEM budgeting
# ---------------------------------------------------------------------------

def _vmem_capacity_bytes():
    try:
        cap = getattr(pltpu.get_tpu_info(), "vmem_capacity_bytes", None)
        if cap:
            return int(cap)
    except Exception:
        pass
    return 64 * 1024 * 1024  # conservative fallback (v7x per-TC VMEM)


def _divisor_tiles(dim, align):
    """Multiples of `align` that divide `dim`, descending; [dim] if none exist."""
    if dim % align != 0:
        return [dim]
    return [t for t in range(dim, 0, -align) if dim % t == 0]


def _choose_linear_tiles(M, K, Nout, act_isz, w_isz, out_isz, budget,
                         tn_target, tk_target, act_resident=None):
    """Pick (tk, tn), activation residency and VMEM footprint for one Linear."""
    # Output-column tile: lane-dense; keep >=2 tiles when possible so the "parallel"
    # j axis can shard across both v7x TensorCores.
    tn_cap = tn_target
    if Nout % (2 * _LANE) == 0:
        tn_cap = min(tn_cap, Nout // 2)
    tn_cands = _divisor_tiles(Nout, _LANE)
    tn_opts = [t for t in tn_cands if t <= tn_cap] or [tn_cands[-1]]

    tk_cands = _divisor_tiles(K, _LANE)
    tk_opts = [t for t in tk_cands if t <= tk_target] or [tk_cands[-1]]

    if act_resident is None:
        # Keep activations fully resident (single DMA, no re-streaming per output
        # tile) whenever they are a small fraction of the budget.
        act_resident = (M * K * act_isz) * 8 <= budget

    def footprint(tk, tn):
        w = 2 * tk * tn * w_isz                                    # 2x-buffered weights
        act = (M * K * act_isz) if act_resident else (2 * M * tk * act_isz)
        acc = M * tn * 4                                           # f32 accumulator
        out = 2 * M * tn * out_isz                                 # 2x-buffered output
        bias = 2 * tn * 4
        return w + act + acc + out + bias

    for tn in tn_opts:                      # prefer the largest lane-dense tn ...
        for tk in tk_opts:                  # ... then the largest tk that fits
            fp = footprint(tk, tn)
            if fp <= budget:
                return tk, tn, act_resident, fp
    # Nothing fits the budget: fall back to the smallest tiles, streamed activations.
    tk, tn = tk_opts[-1], tn_opts[-1]
    act_resident = False
    return tk, tn, act_resident, footprint(tk, tn)


# ---------------------------------------------------------------------------
# Wrappers
# ---------------------------------------------------------------------------

def pallas_linear(x, w_t, b, *, relu, out_dtype, tn_target=2048, tk_target=6272,
                  act_resident=None):
    """y = act(x @ w_t + b).  x:(M,K) bf16, w_t:(K,N) bf16 pre-transposed, b:(1,N) f32."""
    M, K = x.shape
    K2, Nout = w_t.shape
    assert K == K2

    capacity = _vmem_capacity_bytes()
    budget = int(capacity * 0.70)           # headroom for Pallas/compiler internals
    tk, tn, act_resident, fp = _choose_linear_tiles(
        M, K, Nout, x.dtype.itemsize, w_t.dtype.itemsize,
        jnp.dtype(out_dtype).itemsize, budget, tn_target, tk_target, act_resident)

    grid = (Nout // tn, K // tk)

    if act_resident:
        # Block index constant across the grid -> DMA'd once, stays resident in VMEM.
        x_spec = pl.BlockSpec((M, K), lambda j, k: (0, 0))
    else:
        x_spec = pl.BlockSpec((M, tk), lambda j, k: (0, k))

    # Footprint-derived scoped-VMEM limit (generation-aware, not a blind 64 MiB cap).
    vmem_limit = int(min(capacity, max(32 * 1024 * 1024, fp + 8 * 1024 * 1024)))

    kernel = functools.partial(_linear_kernel, relu=relu, tk=tk,
                               act_resident=act_resident)
    return pl.pallas_call(
        kernel,
        out_shape=jax.ShapeDtypeStruct((M, Nout), out_dtype),
        grid_spec=pltpu.PrefetchScalarGridSpec(
            num_scalar_prefetch=0,
            grid=grid,
            in_specs=[
                x_spec,                                          # activations
                pl.BlockSpec((tk, tn), lambda j, k: (k, j)),     # bf16 weight tile
                pl.BlockSpec((1, tn), lambda j, k: (0, j)),      # f32 bias tile
            ],
            out_specs=pl.BlockSpec((M, tn), lambda j, k: (0, j)),
            scratch_shapes=[pltpu.VMEM((M, tn), jnp.float32)],
        ),
        compiler_params=pltpu.CompilerParams(
            dimension_semantics=("parallel", "arbitrary"),
            vmem_limit_bytes=vmem_limit,
        ),
    )(x, w_t, b)


def _pick_row_tile(dim, target, align=_SUBLANE):
    if dim <= target:
        return dim
    t = (target // align) * align
    while t >= align:
        if dim % t == 0:
            return t
        t -= align
    return dim


def pallas_pool(x2d, p_pad, *, tm_target=512):
    """(N*C, H*W) @ (H*W, 128-padded 49) avg-pool matmul, tiled over rows, bf16 out."""
    R, HW = x2d.shape
    _, Cpad = p_pad.shape
    tm = _pick_row_tile(R, tm_target)
    return pl.pallas_call(
        _pool_kernel,
        out_shape=jax.ShapeDtypeStruct((R, Cpad), jnp.bfloat16),
        grid_spec=pltpu.PrefetchScalarGridSpec(
            num_scalar_prefetch=0,
            grid=(R // tm,),
            in_specs=[
                pl.BlockSpec((tm, HW), lambda i: (i, 0)),
                pl.BlockSpec((HW, Cpad), lambda i: (0, 0)),
            ],
            out_specs=pl.BlockSpec((tm, Cpad), lambda i: (i, 0)),
        ),
        compiler_params=pltpu.CompilerParams(
            dimension_semantics=("parallel",),
        ),
    )(x2d, p_pad)


def adaptive_avgpool_matrix(H, W, out_h=7, out_w=7):
    """Matrix P (H*W, lane-padded out_h*out_w): x2d @ P == AdaptiveAvgPool2d((7,7)).
    Output columns zero-padded up to a multiple of 128 for lane-dense stores."""
    cols = -(-(out_h * out_w) // _LANE) * _LANE
    P = np.zeros((H * W, cols), dtype=np.float32)
    for i in range(out_h):
        hs, he = (i * H) // out_h, -(-((i + 1) * H) // out_h)  # floor / ceil
        for j in range(out_w):
            ws, we = (j * W) // out_w, -(-((j + 1) * W) // out_w)
            cnt = (he - hs) * (we - ws)
            for h in range(hs, he):
                for w in range(ws, we):
                    P[h * W + w, i * out_w + j] = 1.0 / cnt
    return jnp.asarray(P)


def vgg_classifier_forward(x, params, *, tn_target=2048, tk_target=6272,
                           act_resident=None):
    """x: (N, C, H, W) float32 NCHW (like PyTorch). Returns (N, num_classes) f32."""
    N, C, H, W = x.shape
    num_classes = params["num_classes"]

    # --- avgpool + flatten ---
    if (H, W) == (7, 7):
        # AdaptiveAvgPool2d((7,7)) is identity on 7x7 inputs (standard VGG case):
        # skip the pooling kernel entirely.
        flat = x.reshape(N, C * POOL_OUT).astype(jnp.bfloat16)
    else:
        x2d = x.reshape(N * C, H * W)
        pooled_pad = pallas_pool(x2d, params["pool_matrix"])        # (N*C, 128) bf16
        flat = pooled_pad[:, :POOL_OUT].reshape(N, C * POOL_OUT)    # torch .view order

    # pad tiny batch up to a sublane multiple of 8; classifier runs on bf16 inputs
    M = -(-N // _SUBLANE) * _SUBLANE
    if M != N:
        flat = jnp.pad(flat, ((0, M - N), (0, 0)))

    # --- classifier: Linear -> ReLU -> (Dropout=id) -> Linear -> ReLU -> Linear ---
    h = pallas_linear(flat, params["w1t"], params["b1"], relu=True,
                      out_dtype=jnp.bfloat16, tn_target=tn_target,
                      tk_target=tk_target, act_resident=act_resident)
    h = pallas_linear(h, params["w2t"], params["b2"], relu=True,
                      out_dtype=jnp.bfloat16, tn_target=tn_target,
                      tk_target=tk_target, act_resident=act_resident)
    out = pallas_linear(h, params["w3t"], params["b3"], relu=False,
                        out_dtype=jnp.float32, tn_target=tn_target,
                        tk_target=tk_target, act_resident=act_resident)
    return out[:N, :num_classes]


# ---------------------------------------------------------------------------
# Deterministic parameter init + reference + test
# ---------------------------------------------------------------------------

def init_params(key, in_features, hidden, num_classes, H, W):
    """Weights pre-transposed to (in, out), bf16; biases f32 (1, out).
    The final layer is zero-padded to a lane-dense multiple of 128 columns."""
    ks = jax.random.split(key, 6)

    def lin(kw, kb, fan_in, fan_out, pad_out=None):
        bound = 1.0 / np.sqrt(fan_in)
        w_t = jax.random.uniform(kw, (fan_in, fan_out), jnp.float32, -bound, bound)
        b = jax.random.uniform(kb, (1, fan_out), jnp.float32, -bound, bound)
        if pad_out is not None and pad_out != fan_out:
            w_t = jnp.pad(w_t, ((0, 0), (0, pad_out - fan_out)))
            b = jnp.pad(b, ((0, 0), (0, pad_out - fan_out)))
        return w_t.astype(jnp.bfloat16), b

    nc_pad = -(-num_classes // _LANE) * _LANE
    w1t, b1 = lin(ks[0], ks[1], in_features, hidden)
    w2t, b2 = lin(ks[2], ks[3], hidden, hidden)
    w3t, b3 = lin(ks[4], ks[5], hidden, num_classes, pad_out=nc_pad)
    return {"w1t": w1t, "b1": b1, "w2t": w2t, "b2": b2, "w3t": w3t, "b3": b3,
            "pool_matrix": adaptive_avgpool_matrix(H, W),
            "num_classes": num_classes}


def reference_forward(x, params):
    """Pure-JAX reference mirroring the eval-mode forward (bf16 weight storage)."""
    N, C, H, W = x.shape
    num_classes = params["num_classes"]
    if (H, W) == (7, 7):
        flat = x.reshape(N, C * POOL_OUT)
    else:
        x2d = x.reshape(N * C, H * W)
        pooled = jnp.dot(x2d, params["pool_matrix"][:, :POOL_OUT],
                         precision=jax.lax.Precision.HIGHEST)
        flat = pooled.reshape(N, C * POOL_OUT)
    flat = flat.astype(jnp.bfloat16)

    def lin(a, w_t, b, relu):
        y = jnp.dot(a.astype(jnp.float32), w_t.astype(jnp.float32),
                    precision=jax.lax.Precision.HIGHEST) + b
        return jnp.maximum(y, 0.0) if relu else y

    h = lin(flat, params["w1t"], params["b1"], True).astype(jnp.bfloat16)
    h = lin(h, params["w2t"], params["b2"], True).astype(jnp.bfloat16)
    return lin(h, params["w3t"], params["b3"], False)[:, :num_classes]


if __name__ == "__main__":
    # Small shapes consistent with the module: batch=2, channels=8, spatial=14x14
    # (adaptive-pooled to 7x7), classifier hidden=256, num_classes=100 (pads to 128).
    N, C, H, W = 2, 8, 14, 14
    hidden, num_classes = 256, 100

    key = jax.random.PRNGKey(0)
    kx, kp = jax.random.split(key)
    x = jax.random.normal(kx, (N, C, H, W), dtype=jnp.float32)
    params = init_params(kp, C * POOL_OUT, hidden, num_classes, H, W)
    ref = reference_forward(x, params)

    # Small tile targets so the toy shapes exercise multi-tile output grids and
    # multi-step K accumulation (defaults 2048/6272 are sized for real VGG layers).
    out = vgg_classifier_forward(x, params, tn_target=128, tk_target=128)
    out = jax.block_until_ready(out)
    assert out.shape == (N, num_classes)
    # tolerance covers bf16 activation rounding + MXU accumulation-order differences
    np.testing.assert_allclose(np.asarray(out), np.asarray(ref), rtol=1e-2, atol=1e-2)

    # Also exercise the streamed-activation path (used when M*K is too large to keep
    # the whole activation block resident in VMEM).
    out2 = jax.block_until_ready(
        vgg_classifier_forward(x, params, tn_target=128, tk_target=128,
                               act_resident=False))
    np.testing.assert_allclose(np.asarray(out2), np.asarray(ref), rtol=1e-2, atol=1e-2)

    # And the (H, W) == (7, 7) identity-pool fast path with default (large) tiles.
    x7 = jax.random.normal(kx, (N, C, 7, 7), dtype=jnp.float32)
    p7 = init_params(kp, C * POOL_OUT, hidden, num_classes, 7, 7)
    out7 = jax.block_until_ready(vgg_classifier_forward(x7, p7))
    np.testing.assert_allclose(np.asarray(out7), np.asarray(reference_forward(x7, p7)),
                               rtol=1e-2, atol=1e-2)

    print("KERNEL_OK")
</pallas_src>

<mosaic_0001>
module attributes {stable_mosaic.version = 11 : i64} {
  func.func @_pool_kernel(%arg0: i32, %arg1: memref<16x196xf32, #tpu.memory_space<vmem>>, %arg2: memref<196x128xf32, #tpu.memory_space<vmem>>, %arg3: memref<16x128xbf16, #tpu.memory_space<vmem>>) attributes {dimension_semantics = [#tpu.dimension_semantics<parallel>], iteration_bounds = array<i64: 1>, scalar_prefetch = 0 : i64, scratch_operands = 0 : i64, tpu.core_type = #tpu.core_type<tc>, window_params = [{transform_indices = @transform_0, window_bounds = array<i64: 16, 196>}, {pipeline_mode = #tpu.pipeline_mode<synchronous>, transform_indices = @transform_1, window_bounds = array<i64: 196, 128>}, {transform_indices = @transform_2, window_bounds = array<i64: 16, 128>}]} {
    %c0 = arith.constant 0 : index
    %c0_0 = arith.constant 0 : index
    %0 = vector.load %arg1[%c0, %c0_0] : memref<16x196xf32, #tpu.memory_space<vmem>>, vector<16x196xf32>
    %c0_1 = arith.constant 0 : index
    %c0_2 = arith.constant 0 : index
    %1 = vector.load %arg2[%c0_1, %c0_2] : memref<196x128xf32, #tpu.memory_space<vmem>>, vector<196x128xf32>
    %cst = arith.constant dense<0.000000e+00> : vector<16x128xf32>
    %2 = tpu.matmul %0, %1, %cst {dimension_numbers = #tpu.dot_dimension_numbers<[1], [0], [0], [1], [0, 0, 1, 1], [], []>} : vector<16x196xf32>, vector<196x128xf32>, vector<16x128xf32> -> vector<16x128xf32>
    %3 = arith.truncf %2 : vector<16x128xf32> to vector<16x128xbf16>
    %c0_3 = arith.constant 0 : index
    %c0_4 = arith.constant 0 : index
    %4 = vector.load %arg3[%c0_3, %c0_4] : memref<16x128xbf16, #tpu.memory_space<vmem>>, vector<16x128xbf16>
    tpu.vector_store %arg3[%c0_3, %c0_4], %3 {strides = array<i32>} : memref<16x128xbf16, #tpu.memory_space<vmem>>, vector<16x128xbf16>,
    return
  }
  func.func @transform_0(%arg0: i32) -> (i32, i32) {
    %c0_i32 = arith.constant 0 : i32
    %c0_i32_0 = arith.constant 0 : i32
    return %arg0, %c0_i32 : i32, i32
  }
  func.func @transform_1(%arg0: i32) -> (i32, i32) {
    %c0_i32 = arith.constant 0 : i32
    %c0_i32_0 = arith.constant 0 : i32
    %c0_i32_1 = arith.constant 0 : i32
    return %c0_i32, %c0_i32_0 : i32, i32
  }
  func.func @transform_2(%arg0: i32) -> (i32, i32) {
    %c0_i32 = arith.constant 0 : i32
    %c0_i32_0 = arith.constant 0 : i32
    return %arg0, %c0_i32 : i32, i32
  }
}

</mosaic_0001>

<llo_original>
// kernel: tpu_custom_call.1
$region0: #{tpu_custom_call.1}
  #allocation0 [shape = 'u32[]', space=smem, size = 0x4, offset = 0x4, fixed_abs, tag = 'smem constant byte address 0x4 - core index']
  #allocation1 [shape = 'u32[72,128]{1,0:T(1,128)}', space=vmem, size = 0x9000, scoped, tag = 'internal scratch']
  %s0 = inlined_call_operand.hbm [shape: f32[16,196], index: 0, kind: input, shape index: {}]
  %s1 = inlined_call_operand.hbm [shape: f32[196,128], index: 1, kind: input, shape index: {}]
  %s2 = inlined_call_operand.hbm [shape: bf16[16,128], index: 2, kind: output, shape index: {}]
  %s3 = sld [smem:[#allocation0]]
  $region26: #{tpu_custom_call.1} parent=0
    _
  %s5 = ssub.s32 1, %s3
  %s6 = scalar_select 0, %s5, %s3
  $region1: #{tpu_custom_call.1} parent=0
    #allocation2 [shape = 'u8[16384]{0}', space=vmem, size = 0x4000, scoped, tag = 'input window, operand 0, single buffered']
    #allocation3 [shape = 's32[1]{0}', space=sflag, size = 0x4, scoped, tag = 'scoped memory for tpu_custom_call.1']
    #allocation4 [shape = 's32[1]{0}', space=sflag, size = 0x4, scoped, tag = 'scoped memory for tpu_custom_call.1']
    #allocation5 [shape = 'u8[102400]{0}', space=vmem, size = 0x19000, scoped, tag = 'input window, operand 1, single buffered']
    #allocation6 [shape = 's32[1]{0}', space=sflag, size = 0x4, scoped, tag = 'scoped memory for tpu_custom_call.1']
    #allocation7 [shape = 'u8[4096]{0}', space=vmem, size = 0x1000, scoped, tag = 'output window, operand 0, single buffered']
    %7 = vsyncpa [#allocation3], 0
    %8 = vsyncpa [#allocation6], 0
    %9 = vsyncpa [#allocation4], 0
    // Predicated region
    $region2: #{tpu_custom_call.1} parent=1 // pred_check
      _
    $region3: #{tpu_custom_call.1} parent=1 // pred_check_branch
      %11 = sbr.rel (0) target = $region5
    $region4: #{tpu_custom_call.1} parent=1 // pred_region
      %13 = vsyncadd [#allocation3], 0
      %s14 = sshll.u32 %s0, 4
      %s15 = int_to_ptr.hbm [resolvable:$true] %s14
      %s16 = sshll.u32 [#allocation2], 4
      %s17 = int_to_ptr.vmem [resolvable:$true] %s16
      %22 = dma.hbm_to_vmem [thread:$0]  %s15, 512, %s17, [#allocation3], 256, 256, 16
    $region5: #{tpu_custom_call.1} parent=1 // pred_fallthru
      _
    // Predicated region
    $region6: #{tpu_custom_call.1} parent=1 // pred_check
      _
    $region7: #{tpu_custom_call.1} parent=1 // pred_check_branch
      %24 = sbr.rel (0) target = $region9
    $region8: #{tpu_custom_call.1} parent=1 // pred_region
      %26 = vsyncadd [#allocation6], 0
      %s27 = sshll.u32 %s1, 4
      %s28 = int_to_ptr.hbm [resolvable:$true] %s27
      %s29 = sshll.u32 [#allocation5], 4
      %s30 = int_to_ptr.vmem [resolvable:$true] %s29
      %35 = dma.hbm_to_vmem [thread:$0]  %s28, 3200, %s30, [#allocation6], 128, 128, 8
    $region9: #{tpu_custom_call.1} parent=1 // pred_fallthru
      _
    // Predicated region
    $region10: #{tpu_custom_call.1} parent=1 // pred_check
      _
    $region11: #{tpu_custom_call.1} parent=1 // pred_check_branch
      %37 = sbr.rel (0) target = $region13
    $region12: #{tpu_custom_call.1} parent=1 // pred_region
      %39 = dma.done [#allocation3], 512
    $region13: #{tpu_custom_call.1} parent=1 // pred_fallthru
      _
    // Predicated region
    $region14: #{tpu_custom_call.1} parent=1 // pred_check
      _
    $region15: #{tpu_custom_call.1} parent=1 // pred_check_branch
      %41 = sbr.rel (0) target = $region17
    $region16: #{tpu_custom_call.1} parent=1 // pred_region
      %43 = dma.done [#allocation6], 3200
    $region17: #{tpu_custom_call.1} parent=1 // pred_fallthru
      _
    %v44 = vld [vmem:[#allocation2] sm:$0xff]
    %v45 = vld [vmem:[#allocation2 + $0x8] sm:$0xff]
    %v46 = vld [vmem:[#allocation2 + $0x10] sm:$0xff]
    %v47 = vld [vmem:[#allocation2 + $0x18] sm:$0xff]
    %v48 = vld [vmem:[#allocation5] sm:$0xff]
    %v49 = vld [vmem:[#allocation5 + $0x8] sm:$0xff]
    %v50 = vld [vmem:[#allocation5 + $0x10] sm:$0xff]
    %v51 = vld [vmem:[#allocation5 + $0x18] sm:$0xff]
    %v52 = vld [vmem:[#allocation5 + $0x20] sm:$0xff]
    %v53 = vld [vmem:[#allocation5 + $0x28] sm:$0xff]
    %v54 = vld [vmem:[#allocation5 + $0x30] sm:$0xff]
    %v55 = vld [vmem:[#allocation5 + $0x38] sm:$0xff]
    %v56 = vld [vmem:[#allocation5 + $0x40] sm:$0xff]
    %v57 = vld [vmem:[#allocation5 + $0x48] sm:$0xff]
    %v58 = vld [vmem:[#allocation5 + $0x50] sm:$0xff]
    %v59 = vld [vmem:[#allocation5 + $0x58] sm:$0xff]
    %v60 = vld [vmem:[#allocation5 + $0x60] sm:$0xff]
    %v61 = vld [vmem:[#allocation5 + $0x68] sm:$0xff]
    %v62 = vld [vmem:[#allocation5 + $0x70] sm:$0xff]
    %v63 = vld [vmem:[#allocation5 + $0x78] sm:$0xff]
    %v64 = vld [vmem:[#allocation5 + $0x80] sm:$0xff]
    %v65 = vld [vmem:[#allocation5 + $0x88] sm:$0xff]
    %v66 = vld [vmem:[#allocation5 + $0x90] sm:$0xff]
    %v67 = vld [vmem:[#allocation5 + $0x98] sm:$0xff]
    %v68 = vld [vmem:[#allocation5 + $0xa0] sm:$0xff]
    %v69 = vld [vmem:[#allocation5 + $0xa8] sm:$0xff]
    %v70 = vld [vmem:[#allocation5 + $0xb0] sm:$0xff]
    %v71 = vld [vmem:[#allocation5 + $0xb8] sm:$0xff]
    %v72 = vld [vmem:[#allocation5 + $0xc0] sm:$0xf]
    %vm73 = vcmask 556032
    %v75 = vsel %vm73, %v45, 0
    %v78 = vsel %vm73, %v47, 0
    %vm80 = vcmask 1043456
    %v82 = vsel %vm80, %v72, 0
    %84 = vmatpush.msra.mxu0 %v63
    %85 = vmatpush.msra.mxu0 %v62
    %86 = vmatpush.msra.mxu0 %v61
    %87 = vmatpush.msra.mxu0 %v60
    %88 = vmatpush.msra.mxu0 %v59
    %89 = vmatpush.msra.mxu0 %v58
    %90 = vmatpush.msra.mxu0 %v57
    %91 = vmatpush.msra.mxu0 %v56
    %92 = vmatpush.msra.mxu0 %v55
    %93 = vmatpush.msra.mxu0 %v54
    %94 = vmatpush.msra.mxu0 %v53
    %95 = vmatpush.msra.mxu0 %v52
    %96 = vmatpush.msra.mxu0 %v51
    %97 = vmatpush.msra.mxu0 %v50
    %98 = vmatpush.msra.mxu0 %v49
    %99 = vmatpush.msra.mxu0 %v48
    %100 = vmatmul.f32.gmra.mxu0 %v44
    %v101 = vpop.f32.mrf.mxu0
    %v102 = vadd.f32 0.0, %v101
    %103 = vmatmul.f32.gmra.mxu0 %v46
    %v104 = vpop.f32.mrf.mxu0
    %v105 = vadd.f32 0.0, %v104
    %106 = vdwg.mxu0
    %107 = vmatpush.msra.mxu0 0.0
    %108 = vmatpush.msra.mxu0 0.0
    %109 = vmatpush.msra.mxu0 0.0
    %110 = vmatpush.msra.mxu0 0.0
    %111 = vmatpush.msra.mxu0 0.0
    %112 = vmatpush.msra.mxu0 0.0
    %113 = vmatpush.msra.mxu0 0.0
    %114 = vmatpush.msra.mxu0 %v82
    %115 = vmatpush.msra.mxu0 %v71
    %116 = vmatpush.msra.mxu0 %v70
    %117 = vmatpush.msra.mxu0 %v69
    %118 = vmatpush.msra.mxu0 %v68
    %119 = vmatpush.msra.mxu0 %v67
    %120 = vmatpush.msra.mxu0 %v66
    %121 = vmatpush.msra.mxu0 %v65
    %122 = vmatpush.msra.mxu0 %v64
    %123 = vmatmul.f32.gmra.mxu0 %v75
    %v124 = vpop.f32.mrf.mxu0
    %v125 = vadd.f32 %v102, %v124
    %126 = vmatmul.f32.gmra.mxu0 %v78
    %v127 = vpop.f32.mrf.mxu0
    %v128 = vadd.f32 %v105, %v127
    %129 = vdwg.mxu0
    %v130 = vpack.c.bf16 %v125, %v125
    %v131 = vpack.c.bf16 %v128, %v128
    %132 = vst [vmem:[#allocation7] sm:$0xf] %v130
    %133 = vst [vmem:[#allocation7 + $0x4] sm:$0xf] %v131
    // Predicated region
    $region18: #{tpu_custom_call.1} parent=1 // pred_check
      _
    $region19: #{tpu_custom_call.1} parent=1 // pred_check_branch
      %135 = sbr.rel (0) target = $region21
    $region20: #{tpu_custom_call.1} parent=1 // pred_region
      %137 = vsyncadd [#allocation4], 0
      %s138 = sshll.u32 [#allocation7], 4
      %s139 = int_to_ptr.vmem [resolvable:$true] %s138
      %s140 = sshll.u32 %s2, 4
      %s141 = int_to_ptr.hbm [resolvable:$true] %s140
      %146 = dma.vmem_to_hbm [thread:$0]  %s139, 128, %s141, [#allocation4], 64, 64, 4
    $region21: #{tpu_custom_call.1} parent=1 // pred_fallthru
      _
    // Predicated region
    $region22: #{tpu_custom_call.1} parent=1 // pred_check
      _
    $region23: #{tpu_custom_call.1} parent=1 // pred_check_branch
      %148 = sbr.rel (0) target = $region25
    $region24: #{tpu_custom_call.1} parent=1 // pred_region
      %150 = dma.done [#allocation4], 128
    $region25: #{tpu_custom_call.1} parent=1 // pred_fallthru
      _
    %151 = vsyncpa [#allocation3], 1
    %152 = vsyncpa [#allocation6], 1
    %153 = vsyncpa [#allocation4], 1

</llo_original>
